<compile_context>
chip_gen: v5e
topology: v5e:2x2
jax: 0.10.0
libtpu: 0.0.40
codegen_flags: <defaults>
</compile_context>

<pallas_src>
import jax
import jax.numpy as jnp
from jax import lax
from jax.experimental import pallas as pl
from jax.experimental.pallas import tpu as pltpu

LANES = 128
SUBLANES = 8
CHUNK_ROWS = 512                      # accumulation chunk (multiple of 32 -> granule-aligned for all dtypes)
MAX_BLOCK_BYTES = 4 * 1024 * 1024     # per-input, per-pipeline-buffer block size
VMEM_LIMIT_BYTES = 32 * 1024 * 1024   # 2 inputs x 2 buffers x 4 MiB = 16 MiB + headroom (safe on v5e/v6e/v7x)


def _round_up(x, m):
    return ((x + m - 1) // m) * m


def _sublane_granule(itemsize):
    # Packed-tile sublane granule: 8 for f32, 16 for bf16, 32 for int8 / fp8.
    return max(SUBLANES, 32 // max(1, itemsize))


def _as_slab(x):
    """Lane-dense 2-D view of x with no large materialized padding.

    Preferred path: collapse only the leading dims (layout-free, last two dims
    untouched) when the last dim is already a lane multiple.  Fallback: flatten
    and pad by < 128 zero elements to a (rows, 128) slab.  The ragged row tail
    of the last grid block is handled by in-kernel masking, never by jnp.pad.
    """
    itemsize = x.dtype.itemsize
    granule = _sublane_granule(itemsize)
    if (x.ndim >= 2 and x.shape[-1] % LANES == 0
            and x.shape[-1] * granule * itemsize <= MAX_BLOCK_BYTES):
        return x.reshape(-1, x.shape[-1])
    flat = x.reshape(-1)
    pad = (-flat.shape[0]) % LANES
    if pad:
        flat = jnp.pad(flat, (0, pad))  # <= 127 zeros; exact for sum / sum-of-squares
    return flat.reshape(-1, LANES)


def _block_geometry(rows, width, itemsize):
    """Pick (block_rows, chunk_rows, num_blocks) for a (rows, width) slab."""
    granule = _sublane_granule(itemsize)
    cap = max(granule, MAX_BLOCK_BYTES // (width * itemsize))
    if cap >= CHUNK_ROWS:
        cap = (cap // CHUNK_ROWS) * CHUNK_ROWS
    else:
        cap = max(granule, (cap // granule) * granule)
    if rows <= cap:
        block_rows = _round_up(rows, granule)
        if block_rows > CHUNK_ROWS:
            block_rows = min(_round_up(block_rows, CHUNK_ROWS), cap)
    else:
        block_rows = cap
    num_blocks = pl.cdiv(rows, block_rows)
    chunk_rows = min(block_rows, CHUNK_ROWS)  # block_rows % chunk_rows == 0 by construction
    return block_rows, chunk_rows, num_blocks


def _make_partials_kernel(num_inputs, block_rows, chunk_rows, width, rows_valid):
    """Kernel writing per-block [sum, sum_sq] for each input to one SMEM row."""
    nchunks = block_rows // chunk_rows
    ragged = (rows_valid % block_rows) != 0  # static: only the edge block has undefined rows

    def accumulate(x_raw, row_start, carry):
        a1, a2 = carry
        xf = x_raw.astype(jnp.float32)
        if ragged:
            # Rows >= rows_valid in the edge block hold undefined data; mask via
            # select (not multiply) so NaN/Inf garbage cannot leak through.
            row = row_start + lax.broadcasted_iota(jnp.int32, xf.shape, 0)
            xf = jnp.where(row < rows_valid, xf, 0.0)
        return (a1 + jnp.sum(xf, axis=0, keepdims=True),
                a2 + jnp.sum(xf * xf, axis=0, keepdims=True))

    def block_sums(x_ref, block_start):
        zero = jnp.zeros((1, width), jnp.float32)
        if nchunks == 1:
            a1, a2 = accumulate(x_ref[...], block_start, (zero, zero))
        else:
            def body(c, carry):
                r0 = pl.multiple_of(c * chunk_rows, chunk_rows)
                return accumulate(x_ref[pl.ds(r0, chunk_rows), :],
                                  block_start + c * chunk_rows, carry)
            a1, a2 = lax.fori_loop(0, nchunks, body, (zero, zero))
        return jnp.sum(a1), jnp.sum(a2)

    def kernel(*refs):
        out_ref = refs[num_inputs]
        block_start = pl.program_id(0) * block_rows
        for t in range(num_inputs):
            s1, s2 = block_sums(refs[t], block_start)
            out_ref[0, 2 * t] = s1
            out_ref[0, 2 * t + 1] = s2

    return kernel


def _partial_sums(slabs):
    """Return [sum_0, sumsq_0, sum_1, sumsq_1, ...] over equally-shaped slabs."""
    rows, width = slabs[0].shape
    itemsize = slabs[0].dtype.itemsize
    block_rows, chunk_rows, num_blocks = _block_geometry(rows, width, itemsize)
    k = 2 * len(slabs)
    kernel = _make_partials_kernel(len(slabs), block_rows, chunk_rows, width, rows)

    total_elems = sum(int(s.size) for s in slabs)
    bytes_accessed = sum(int(s.size) * s.dtype.itemsize for s in slabs) + num_blocks * k * 4

    parts = pl.pallas_call(
        kernel,
        out_shape=jax.ShapeDtypeStruct((num_blocks, k), jnp.float32),
        grid_spec=pltpu.PrefetchScalarGridSpec(
            num_scalar_prefetch=0,
            grid=(num_blocks,),
            in_specs=[pl.BlockSpec((block_rows, width), lambda i: (i, 0))
                      for _ in slabs],
            out_specs=pl.BlockSpec((1, k), lambda i: (i, 0),
                                   memory_space=pltpu.MemorySpace.SMEM),
        ),
        compiler_params=pltpu.CompilerParams(
            dimension_semantics=("parallel",),
            vmem_limit_bytes=VMEM_LIMIT_BYTES),
        cost_estimate=pl.CostEstimate(
            flops=3 * total_elems, transcendentals=0, bytes_accessed=bytes_accessed),
    )(*slabs)
    return jnp.sum(parts, axis=0)  # (k,) tiny combine


def lsgan_loss(real_logit, fake_logit):
    """Returns (d_loss, g_loss) as float32 scalars, matching LSGanLoss.forward."""
    n_real = real_logit.size
    n_fake = fake_logit.size
    real_slab = _as_slab(real_logit)
    fake_slab = _as_slab(fake_logit)

    if real_slab.shape == fake_slab.shape and real_slab.dtype == fake_slab.dtype:
        # Common case: one fused call streams both logit tensors through a
        # single fully-parallel pipelined grid.
        sum_r, sum_r2, sum_f, sum_f2 = _partial_sums([real_slab, fake_slab])
    else:
        # Different sizes/dtypes: size the grid per tensor so the smaller one
        # never streams padding.
        sum_r, sum_r2 = _partial_sums([real_slab])
        sum_f, sum_f2 = _partial_sums([fake_slab])

    nr = jnp.float32(n_real)
    nf = jnp.float32(n_fake)
    # mean((x-1)^2) = (sum(x^2) - 2*sum(x) + n) / n; zero lane padding and
    # masked edge rows contribute exactly nothing to sum(x) / sum(x^2).
    d_loss = 0.5 * ((sum_r2 - 2.0 * sum_r + nr) / nr + sum_f2 / nf)
    g_loss = (sum_f2 - 2.0 * sum_f + nf) / nf
    return d_loss, g_loss


def lsgan_loss_ref(real_logit, fake_logit):
    r = real_logit.astype(jnp.float32)
    f = fake_logit.astype(jnp.float32)
    g = jnp.mean((f - 1.0) ** 2)
    d = 0.5 * (jnp.mean((r - 1.0) ** 2) + jnp.mean(f ** 2))
    return d, g


if __name__ == "__main__":
    key = jax.random.PRNGKey(0)
    k_real, k_fake = jax.random.split(key)
    # Discriminator (PatchGAN-style) logits, NCHW.
    real_logit = jax.random.normal(k_real, (2, 4, 16, 16), dtype=jnp.float32)
    fake_logit = jax.random.normal(k_fake, (2, 4, 16, 16), dtype=jnp.float32)

    loss_fn = jax.jit(lsgan_loss)
    d_loss, g_loss = loss_fn(real_logit, fake_logit)
    jax.block_until_ready((d_loss, g_loss))

    d_ref, g_ref = lsgan_loss_ref(real_logit, fake_logit)
    assert jnp.allclose(d_loss, d_ref, rtol=1e-5, atol=1e-5), (d_loss, d_ref)
    assert jnp.allclose(g_loss, g_ref, rtol=1e-5, atol=1e-5), (g_loss, g_ref)

    print("KERNEL_OK")
</pallas_src>

<mosaic_0001>
module attributes {stable_mosaic.version = 11 : i64} {
  func.func @kernel(%arg0: i32, %arg1: memref<16x128xf32, #tpu.memory_space<vmem>>, %arg2: memref<16x128xf32, #tpu.memory_space<vmem>>, %arg3: memref<1x4xf32, #tpu.memory_space<smem>>) attributes {dimension_semantics = [#tpu.dimension_semantics<parallel>], iteration_bounds = array<i64: 1>, scalar_prefetch = 0 : i64, scratch_operands = 0 : i64, tpu.core_type = #tpu.core_type<tc>, window_params = [{transform_indices = @transform_0, window_bounds = array<i64: 16, 128>}, {transform_indices = @transform_1, window_bounds = array<i64: 16, 128>}, {transform_indices = @transform_2, window_bounds = array<i64: 1, 4>}]} {
    %cst = arith.constant 0.000000e+00 : f32
    %0 = vector.broadcast %cst : f32 to vector<1x128xf32>
    %c0 = arith.constant 0 : index
    %c0_0 = arith.constant 0 : index
    %1 = vector.load %arg1[%c0, %c0_0] : memref<16x128xf32, #tpu.memory_space<vmem>>, vector<16x128xf32>
    %cst_1 = arith.constant dense<0.000000e+00> : vector<128xf32>
    %2 = vector.multi_reduction <add>, %1, %cst_1 [0] : vector<16x128xf32> to vector<128xf32>
    %3 = vector.shape_cast %2 : vector<128xf32> to vector<1x128xf32>
    %4 = arith.addf %0, %3 : vector<1x128xf32>
    %5 = arith.mulf %1, %1 : vector<16x128xf32>
    %cst_2 = arith.constant dense<0.000000e+00> : vector<128xf32>
    %6 = vector.multi_reduction <add>, %5, %cst_2 [0] : vector<16x128xf32> to vector<128xf32>
    %7 = vector.shape_cast %6 : vector<128xf32> to vector<1x128xf32>
    %8 = arith.addf %0, %7 : vector<1x128xf32>
    %9 = vector.shape_cast %4 : vector<1x128xf32> to vector<1x1x128xf32>
    %cst_3 = arith.constant dense<0.000000e+00> : vector<1xf32>
    %10 = vector.multi_reduction <add>, %9, %cst_3 [1, 2] : vector<1x1x128xf32> to vector<1xf32>
    %11 = vector.shape_cast %10 : vector<1xf32> to vector<1x1x1xf32>
    %12 = vector.extract %11[0, 0, 0] : f32 from vector<1x1x1xf32>
    %13 = vector.shape_cast %8 : vector<1x128xf32> to vector<1x1x128xf32>
    %cst_4 = arith.constant dense<0.000000e+00> : vector<1xf32>
    %14 = vector.multi_reduction <add>, %13, %cst_4 [1, 2] : vector<1x1x128xf32> to vector<1xf32>
    %15 = vector.shape_cast %14 : vector<1xf32> to vector<1x1x1xf32>
    %16 = vector.extract %15[0, 0, 0] : f32 from vector<1x1x1xf32>
    %c0_5 = arith.constant 0 : index
    %c0_6 = arith.constant 0 : index
    %17 = memref.load %arg3[%c0_5, %c0_6] : memref<1x4xf32, #tpu.memory_space<smem>>
    memref.store %12, %arg3[%c0_5, %c0_6] : memref<1x4xf32, #tpu.memory_space<smem>>
    %c0_7 = arith.constant 0 : index
    %c1 = arith.constant 1 : index
    %18 = memref.load %arg3[%c0_7, %c1] : memref<1x4xf32, #tpu.memory_space<smem>>
    memref.store %16, %arg3[%c0_7, %c1] : memref<1x4xf32, #tpu.memory_space<smem>>
    %cst_8 = arith.constant 0.000000e+00 : f32
    %19 = vector.broadcast %cst_8 : f32 to vector<1x128xf32>
    %c0_9 = arith.constant 0 : index
    %c0_10 = arith.constant 0 : index
    %20 = vector.load %arg2[%c0_9, %c0_10] : memref<16x128xf32, #tpu.memory_space<vmem>>, vector<16x128xf32>
    %cst_11 = arith.constant dense<0.000000e+00> : vector<128xf32>
    %21 = vector.multi_reduction <add>, %20, %cst_11 [0] : vector<16x128xf32> to vector<128xf32>
    %22 = vector.shape_cast %21 : vector<128xf32> to vector<1x128xf32>
    %23 = arith.addf %19, %22 : vector<1x128xf32>
    %24 = arith.mulf %20, %20 : vector<16x128xf32>
    %cst_12 = arith.constant dense<0.000000e+00> : vector<128xf32>
    %25 = vector.multi_reduction <add>, %24, %cst_12 [0] : vector<16x128xf32> to vector<128xf32>
    %26 = vector.shape_cast %25 : vector<128xf32> to vector<1x128xf32>
    %27 = arith.addf %19, %26 : vector<1x128xf32>
    %28 = vector.shape_cast %23 : vector<1x128xf32> to vector<1x1x128xf32>
    %cst_13 = arith.constant dense<0.000000e+00> : vector<1xf32>
    %29 = vector.multi_reduction <add>, %28, %cst_13 [1, 2] : vector<1x1x128xf32> to vector<1xf32>
    %30 = vector.shape_cast %29 : vector<1xf32> to vector<1x1x1xf32>
    %31 = vector.extract %30[0, 0, 0] : f32 from vector<1x1x1xf32>
    %32 = vector.shape_cast %27 : vector<1x128xf32> to vector<1x1x128xf32>
    %cst_14 = arith.constant dense<0.000000e+00> : vector<1xf32>
    %33 = vector.multi_reduction <add>, %32, %cst_14 [1, 2] : vector<1x1x128xf32> to vector<1xf32>
    %34 = vector.shape_cast %33 : vector<1xf32> to vector<1x1x1xf32>
    %35 = vector.extract %34[0, 0, 0] : f32 from vector<1x1x1xf32>
    %c0_15 = arith.constant 0 : index
    %c2 = arith.constant 2 : index
    %36 = memref.load %arg3[%c0_15, %c2] : memref<1x4xf32, #tpu.memory_space<smem>>
    memref.store %31, %arg3[%c0_15, %c2] : memref<1x4xf32, #tpu.memory_space<smem>>
    %c0_16 = arith.constant 0 : index
    %c3 = arith.constant 3 : index
    %37 = memref.load %arg3[%c0_16, %c3] : memref<1x4xf32, #tpu.memory_space<smem>>
    memref.store %35, %arg3[%c0_16, %c3] : memref<1x4xf32, #tpu.memory_space<smem>>
    return
  }
  func.func @transform_0(%arg0: i32) -> (i32, i32) {
    %c0_i32 = arith.constant 0 : i32
    %c0_i32_0 = arith.constant 0 : i32
    return %arg0, %c0_i32 : i32, i32
  }
  func.func @transform_1(%arg0: i32) -> (i32, i32) {
    %c0_i32 = arith.constant 0 : i32
    %c0_i32_0 = arith.constant 0 : i32
    return %arg0, %c0_i32 : i32, i32
  }
  func.func @transform_2(%arg0: i32) -> (i32, i32) {
    %c0_i32 = arith.constant 0 : i32
    %c0_i32_0 = arith.constant 0 : i32
    return %arg0, %c0_i32 : i32, i32
  }
}

</mosaic_0001>

<llo_original>
// kernel: lsgan_loss.1
$region0: #{lsgan_loss.1}
  #allocation0 [shape = 'u32[]', space=smem, size = 0x4, offset = 0x4, fixed_abs, tag = 'smem constant byte address 0x4 - core index']
  #allocation1 [shape = 'u32[72,128]{1,0:T(1,128)}', space=vmem, size = 0x9000, scoped, tag = 'internal scratch']
  %s0 = inlined_call_operand.vmem [shape: f32[16,128], index: 0, kind: input, shape index: {}]
  %s1 = inlined_call_operand.vmem [shape: f32[16,128], index: 1, kind: input, shape index: {}]
  %s2 = inlined_call_operand.vmem [shape: f32[1,4], index: 2, kind: output, shape index: {}]
  %s3 = sld [smem:[#allocation0]]
  $region18: #{lsgan_loss.1} parent=0
    _
  %s5 = ssub.s32 1, %s3
  %s6 = scalar_select 0, %s5, %s3
  $region1: #{lsgan_loss.1} parent=0
    #allocation2 [shape = 'u8[512]{0}', space=smem, size = 0x200, scoped, tag = 'output window, operand 0, single buffered']
    #allocation3 [shape = 's32[1]{0}', space=sflag, size = 0x4, scoped, tag = 'scoped memory for lsgan_loss.1']
    %7 = vsyncpa [#allocation3], 0
    // Predicated region
    $region2: #{lsgan_loss.1} parent=1 // pred_check
      _
    $region3: #{lsgan_loss.1} parent=1 // pred_check_branch
      %9 = sbr.rel (0) target = $region5
    $region4: #{lsgan_loss.1} parent=1 // pred_region
      _
    $region5: #{lsgan_loss.1} parent=1 // pred_fallthru
      _
    // Predicated region
    $region6: #{lsgan_loss.1} parent=1 // pred_check
      _
    $region7: #{lsgan_loss.1} parent=1 // pred_check_branch
      %11 = sbr.rel (0) target = $region9
    $region8: #{lsgan_loss.1} parent=1 // pred_region
      _
    $region9: #{lsgan_loss.1} parent=1 // pred_fallthru
      _
    %v12 = vld [vmem:[%s0] sm:$0xff]
    %v13 = vld [vmem:[%s0 + $0x8] sm:$0xff]
    %v14 = vadd.f32 %v12, %v13
    %v15 = vrot.slane %v14, 4
    %v16 = vadd.f32 %v14, %v15
    %v17 = vrot.slane %v16, 2
    %v18 = vadd.f32 %v16, %v17
    %v19 = vrot.slane %v18, 1
    %v20 = vadd.f32 %v18, %v19
    %v21 = vadd.f32 %v20, 0.0
    %v22 = vmul.f32 %v12, %v12
    %v23 = vmul.f32 %v13, %v13
    %v24 = vadd.f32 %v22, %v23
    %v25 = vrot.slane %v24, 4
    %v26 = vadd.f32 %v24, %v25
    %v27 = vrot.slane %v26, 2
    %v28 = vadd.f32 %v26, %v27
    %v29 = vrot.slane %v28, 1
    %v30 = vadd.f32 %v28, %v29
    %v31 = vadd.f32 %v30, 0.0
    %vm32 = vcmask 1040384
    %v33 = vsel %vm32, %v21, 0.0
    %34 = vadd.xlane.f32.xlu0 %v33
    %v35 = vpop.xlane.xlu0 %34
    %v36 = vrot.slane %v35, 4
    %v37 = vadd.f32 %v35, %v36
    %v38 = vrot.slane %v37, 2
    %v39 = vadd.f32 %v37, %v38
    %v40 = vrot.slane %v39, 1
    %v41 = vadd.f32 %v39, %v40
    %s42 = vtos %v41
    %v43 = vsel %vm32, %v31, 0.0
    %44 = vadd.xlane.f32.xlu0 %v43
    %v45 = vpop.xlane.xlu0 %44
    %v46 = vrot.slane %v45, 4
    %v47 = vadd.f32 %v45, %v46
    %v48 = vrot.slane %v47, 2
    %v49 = vadd.f32 %v47, %v48
    %v50 = vrot.slane %v49, 1
    %v51 = vadd.f32 %v49, %v50
    %s52 = vtos %v51
    %s53 = scalar_lea.smem [#allocation2], 0
    %54 = sst [smem:[%s53]] %s42
    %s55 = scalar_lea.smem [#allocation2], 1
    %56 = sst [smem:[%s55]] %s52
    %v57 = vld [vmem:[%s1] sm:$0xff]
    %v58 = vld [vmem:[%s1 + $0x8] sm:$0xff]
    %v59 = vadd.f32 %v57, %v58
    %v60 = vrot.slane %v59, 4
    %v61 = vadd.f32 %v59, %v60
    %v62 = vrot.slane %v61, 2
    %v63 = vadd.f32 %v61, %v62
    %v64 = vrot.slane %v63, 1
    %v65 = vadd.f32 %v63, %v64
    %v66 = vadd.f32 %v65, 0.0
    %v67 = vmul.f32 %v57, %v57
    %v68 = vmul.f32 %v58, %v58
    %v69 = vadd.f32 %v67, %v68
    %v70 = vrot.slane %v69, 4
    %v71 = vadd.f32 %v69, %v70
    %v72 = vrot.slane %v71, 2
    %v73 = vadd.f32 %v71, %v72
    %v74 = vrot.slane %v73, 1
    %v75 = vadd.f32 %v73, %v74
    %v76 = vadd.f32 %v75, 0.0
    %v77 = vsel %vm32, %v66, 0.0
    %78 = vadd.xlane.f32.xlu0 %v77
    %v79 = vpop.xlane.xlu0 %78
    %v80 = vrot.slane %v79, 4
    %v81 = vadd.f32 %v79, %v80
    %v82 = vrot.slane %v81, 2
    %v83 = vadd.f32 %v81, %v82
    %v84 = vrot.slane %v83, 1
    %v85 = vadd.f32 %v83, %v84
    %s86 = vtos %v85
    %v87 = vsel %vm32, %v76, 0.0
    %88 = vadd.xlane.f32.xlu0 %v87
    %v89 = vpop.xlane.xlu0 %88
    %v90 = vrot.slane %v89, 4
    %v91 = vadd.f32 %v89, %v90
    %v92 = vrot.slane %v91, 2
    %v93 = vadd.f32 %v91, %v92
    %v94 = vrot.slane %v93, 1
    %v95 = vadd.f32 %v93, %v94
    %s96 = vtos %v95
    %s97 = scalar_lea.smem [#allocation2], 2
    %98 = sst [smem:[%s97]] %s86
    %s99 = scalar_lea.smem [#allocation2], 3
    %100 = sst [smem:[%s99]] %s96
    // Predicated region
    $region10: #{lsgan_loss.1} parent=1 // pred_check
      _
    $region11: #{lsgan_loss.1} parent=1 // pred_check_branch
      %102 = sbr.rel (0) target = $region13
    $region12: #{lsgan_loss.1} parent=1 // pred_region
      %104 = vsyncadd [#allocation3], 0
      %s106 = sshll.u32 %s2, 4
      %s107 = int_to_ptr.vmem [resolvable:$true] %s106
      %109 = dma.smem_to_vmem [#allocation2], 16, %s107, [#allocation3]
    $region13: #{lsgan_loss.1} parent=1 // pred_fallthru
      _
    // Predicated region
    $region14: #{lsgan_loss.1} parent=1 // pred_check
      _
    $region15: #{lsgan_loss.1} parent=1 // pred_check_branch
      %111 = sbr.rel (0) target = $region17
    $region16: #{lsgan_loss.1} parent=1 // pred_region
      %113 = dma.done [#allocation3], 16
    $region17: #{lsgan_loss.1} parent=1 // pred_fallthru
      _
    %114 = sfence
    %115 = vsyncpa [#allocation3], 1

</llo_original>
